<compile_context>
chip_gen: v5e
topology: v5e:2x2
jax: 0.10.0
libtpu: 0.0.40
codegen_flags: <defaults>
</compile_context>

<pallas_src>
import functools

import jax
import jax.numpy as jnp
from jax.experimental import pallas as pl
from jax.experimental.pallas import tpu as pltpu


def _round_up(x, m):
    return (x + m - 1) // m * m


def _matmul_bn_relu_kernel(p_ref, w_ref, scale_ref, shift_ref, o_ref, *,
                           apply_relu):
    """One grid step: single MXU matmul + fused BN (+ ReLU).

    p_ref:     (tm, K)   bf16  im2col patch rows (K = KH*KW*Cin, unpadded)
    w_ref:     (K, Cp)   bf16  conv weights (KH*KW*Cin, Cout), Cout padded
    scale_ref: (1, Cp)   f32   gamma / sqrt(running_var + eps)  (0 in pad)
    shift_ref: (1, Cp)   f32   beta - running_mean * scale      (0 in pad)
    o_ref:     (tm, Cp)  bf16  output rows (lane-dense store)
    """
    acc = jnp.dot(p_ref[...], w_ref[...], preferred_element_type=jnp.float32)
    y = acc * scale_ref[...] + shift_ref[...]
    if apply_relu:
        y = jnp.maximum(y, 0.0)
    o_ref[...] = y.astype(o_ref.dtype)


def basic_conv_forward(x_nchw, weight_oihw, gamma, beta, running_mean,
                       running_var, *, stride=1, padding=0, dilation=1,
                       groups=1, eps=1e-5, relu=True, bn=True, tm=1024):
    """Pallas equivalent of BasicConv.forward (eval-mode BN, groups=1)."""
    N, Cin, H, W = x_nchw.shape
    Cout, Cin_w, KH, KW = weight_oihw.shape
    if groups != 1:
        raise NotImplementedError("groups != 1 not supported")
    assert Cin == Cin_w

    Ho = (H + 2 * padding - dilation * (KH - 1) - 1) // stride + 1
    Wo = (W + 2 * padding - dilation * (KW - 1) - 1) // stride + 1

    # ---- glue (plain JAX): layout, im2col, BN folding --------------------
    x_nhwc = jnp.transpose(x_nchw, (0, 2, 3, 1))
    x_pad = jnp.pad(x_nhwc, ((0, 0), (padding, padding),
                             (padding, padding), (0, 0)))

    # im2col with feature order (kh, kw, cin) to match the weight reshape.
    taps = []
    for kh in range(KH):
        for kw in range(KW):
            h0 = kh * dilation
            w0 = kw * dilation
            taps.append(x_pad[:, h0:h0 + (Ho - 1) * stride + 1:stride,
                              w0:w0 + (Wo - 1) * stride + 1:stride, :])
    patches = jnp.stack(taps, axis=3).reshape(N * Ho * Wo, KH * KW * Cin)
    patches = patches.astype(jnp.bfloat16)

    # weight OIHW -> (KH, KW, Cin, Cout) -> (KH*KW*Cin, Cout)
    w2d = jnp.transpose(weight_oihw, (2, 3, 1, 0)).reshape(KH * KW * Cin, Cout)
    w2d = w2d.astype(jnp.bfloat16)

    if bn:
        scale = gamma / jnp.sqrt(running_var + eps)
        shift = beta - running_mean * scale
    else:
        scale = jnp.ones((Cout,), jnp.float32)
        shift = jnp.zeros((Cout,), jnp.float32)

    M, K = patches.shape

    # Cout padded for lane-dense stores; 256-multiples fill the v6e/v7x MXU.
    c_align = 256 if Cout >= 256 else 128
    Cp = _round_up(Cout, c_align)

    # Big M tiles amortize per-step overhead, but keep grid length >= 2 so the
    # "parallel" axis can be split across TensorCores (v7x megacore).
    tm = max(8, min(tm, _round_up((M + 1) // 2, 8)))
    Mp = _round_up(M, tm)

    # Zero-pad M rows and Cout channels only (K stays unpadded in HBM).
    # Padded channels get scale=shift=0; padded rows are sliced off below.
    patches = jnp.pad(patches, ((0, Mp - M), (0, 0)))
    w2d = jnp.pad(w2d, ((0, 0), (0, Cp - Cout)))
    scale = jnp.pad(scale.astype(jnp.float32), (0, Cp - Cout)).reshape(1, Cp)
    shift = jnp.pad(shift.astype(jnp.float32), (0, Cp - Cout)).reshape(1, Cp)

    kernel = functools.partial(_matmul_bn_relu_kernel, apply_relu=relu)

    out = pl.pallas_call(
        kernel,
        out_shape=jax.ShapeDtypeStruct((Mp, Cp), jnp.bfloat16),
        grid_spec=pltpu.PrefetchScalarGridSpec(
            num_scalar_prefetch=0,
            grid=(Mp // tm,),
            in_specs=[
                pl.BlockSpec((tm, K), lambda m: (m, 0)),
                pl.BlockSpec((K, Cp), lambda m: (0, 0)),   # weights resident
                pl.BlockSpec((1, Cp), lambda m: (0, 0)),
                pl.BlockSpec((1, Cp), lambda m: (0, 0)),
            ],
            out_specs=pl.BlockSpec((tm, Cp), lambda m: (m, 0)),
        ),
        compiler_params=pltpu.CompilerParams(
            dimension_semantics=("parallel",),
            vmem_limit_bytes=64 * 1024 * 1024),
    )(patches, w2d, scale, shift)

    # strip padding (padded rows hold relu(shift), so this slice is required),
    # back to PyTorch NCHW / f32 convention.
    out = out[:M, :Cout].astype(jnp.float32).reshape(N, Ho, Wo, Cout)
    return jnp.transpose(out, (0, 3, 1, 2))


def _reference(x_nchw, weight_oihw, gamma, beta, rmean, rvar, *, stride,
               padding, dilation, eps, relu):
    # Inputs rounded to bf16 like the kernel feed, math in f32.
    xq = x_nchw.astype(jnp.bfloat16).astype(jnp.float32)
    wq = weight_oihw.astype(jnp.bfloat16).astype(jnp.float32)
    y = jax.lax.conv_general_dilated(
        xq, wq, window_strides=(stride, stride),
        padding=((padding, padding), (padding, padding)),
        rhs_dilation=(dilation, dilation),
        dimension_numbers=("NCHW", "OIHW", "NCHW"))
    s = (gamma / jnp.sqrt(rvar + eps)).reshape(1, -1, 1, 1)
    b = (beta - rmean * gamma / jnp.sqrt(rvar + eps)).reshape(1, -1, 1, 1)
    y = y * s + b
    if relu:
        y = jnp.maximum(y, 0.0)
    return y


if __name__ == "__main__":
    # BasicConv(in_planes=4, out_planes=8, kernel_size=3, stride=1, padding=1)
    N, Cin, H, W = 2, 4, 16, 16
    Cout, Ksz = 8, 3
    stride, padding, dilation, eps = 1, 1, 1, 1e-5

    key = jax.random.PRNGKey(0)
    kx, kw, kg, kb, km, kv = jax.random.split(key, 6)
    x = jax.random.normal(kx, (N, Cin, H, W), dtype=jnp.float32)
    weight = jax.random.normal(kw, (Cout, Cin, Ksz, Ksz), dtype=jnp.float32) * 0.1
    gamma = jax.random.normal(kg, (Cout,), dtype=jnp.float32) * 0.1 + 1.0
    beta = jax.random.normal(kb, (Cout,), dtype=jnp.float32) * 0.1
    rmean = jax.random.normal(km, (Cout,), dtype=jnp.float32) * 0.1
    rvar = jax.random.uniform(kv, (Cout,), dtype=jnp.float32, minval=0.5,
                              maxval=1.5)

    out = basic_conv_forward(x, weight, gamma, beta, rmean, rvar,
                             stride=stride, padding=padding, dilation=dilation,
                             eps=eps, relu=True, bn=True)
    out = jax.block_until_ready(out)

    ref = _reference(x, weight, gamma, beta, rmean, rvar, stride=stride,
                     padding=padding, dilation=dilation, eps=eps, relu=True)
    assert out.shape == (N, Cout, H, W), out.shape
    # bf16 output store -> loosen tolerance to ~1 bf16 ulp of the value range.
    assert jnp.allclose(out, ref, atol=3e-2, rtol=3e-2), float(
        jnp.max(jnp.abs(out - ref)))
    print("KERNEL_OK")
</pallas_src>

<mosaic_0001>
module attributes {stable_mosaic.version = 11 : i64} {
  func.func @_matmul_bn_relu_kernel(%arg0: i32, %arg1: memref<256x36xbf16, #tpu.memory_space<vmem>>, %arg2: memref<36x128xbf16, #tpu.memory_space<vmem>>, %arg3: memref<1x128xf32, #tpu.memory_space<vmem>>, %arg4: memref<1x128xf32, #tpu.memory_space<vmem>>, %arg5: memref<256x128xbf16, #tpu.memory_space<vmem>>) attributes {dimension_semantics = [#tpu.dimension_semantics<parallel>], iteration_bounds = array<i64: 2>, scalar_prefetch = 0 : i64, scratch_operands = 0 : i64, tpu.core_type = #tpu.core_type<tc>, window_params = [{transform_indices = @transform_0, window_bounds = array<i64: 256, 36>}, {pipeline_mode = #tpu.pipeline_mode<synchronous>, transform_indices = @transform_1, window_bounds = array<i64: 36, 128>}, {pipeline_mode = #tpu.pipeline_mode<synchronous>, transform_indices = @transform_2, window_bounds = array<i64: 1, 128>}, {pipeline_mode = #tpu.pipeline_mode<synchronous>, transform_indices = @transform_3, window_bounds = array<i64: 1, 128>}, {transform_indices = @transform_4, window_bounds = array<i64: 256, 128>}]} {
    %c0 = arith.constant 0 : index
    %c0_0 = arith.constant 0 : index
    %0 = vector.load %arg1[%c0, %c0_0] : memref<256x36xbf16, #tpu.memory_space<vmem>>, vector<256x36xbf16>
    %c0_1 = arith.constant 0 : index
    %c0_2 = arith.constant 0 : index
    %1 = vector.load %arg2[%c0_1, %c0_2] : memref<36x128xbf16, #tpu.memory_space<vmem>>, vector<36x128xbf16>
    %cst = arith.constant dense<0.000000e+00> : vector<256x128xf32>
    %2 = tpu.matmul %0, %1, %cst {dimension_numbers = #tpu.dot_dimension_numbers<[1], [0], [0], [1], [0, 0, 1, 1], [], []>} : vector<256x36xbf16>, vector<36x128xbf16>, vector<256x128xf32> -> vector<256x128xf32>
    %c0_3 = arith.constant 0 : index
    %c0_4 = arith.constant 0 : index
    %3 = vector.load %arg3[%c0_3, %c0_4] : memref<1x128xf32, #tpu.memory_space<vmem>>, vector<1x128xf32>
    %4 = vector.broadcast %3 : vector<1x128xf32> to vector<256x128xf32>
    %5 = arith.mulf %2, %4 : vector<256x128xf32>
    %c0_5 = arith.constant 0 : index
    %c0_6 = arith.constant 0 : index
    %6 = vector.load %arg4[%c0_5, %c0_6] : memref<1x128xf32, #tpu.memory_space<vmem>>, vector<1x128xf32>
    %7 = vector.broadcast %6 : vector<1x128xf32> to vector<256x128xf32>
    %8 = arith.addf %5, %7 : vector<256x128xf32>
    %cst_7 = arith.constant 0.000000e+00 : f32
    %9 = vector.broadcast %cst_7 : f32 to vector<256x128xf32>
    %10 = arith.maximumf %8, %9 : vector<256x128xf32>
    %11 = arith.truncf %10 : vector<256x128xf32> to vector<256x128xbf16>
    %c0_8 = arith.constant 0 : index
    %c0_9 = arith.constant 0 : index
    %12 = vector.load %arg5[%c0_8, %c0_9] : memref<256x128xbf16, #tpu.memory_space<vmem>>, vector<256x128xbf16>
    tpu.vector_store %arg5[%c0_8, %c0_9], %11 {strides = array<i32>} : memref<256x128xbf16, #tpu.memory_space<vmem>>, vector<256x128xbf16>,
    return
  }
  func.func @transform_0(%arg0: i32) -> (i32, i32) {
    %c0_i32 = arith.constant 0 : i32
    %c0_i32_0 = arith.constant 0 : i32
    return %arg0, %c0_i32 : i32, i32
  }
  func.func @transform_1(%arg0: i32) -> (i32, i32) {
    %c0_i32 = arith.constant 0 : i32
    %c0_i32_0 = arith.constant 0 : i32
    %c0_i32_1 = arith.constant 0 : i32
    return %c0_i32, %c0_i32_0 : i32, i32
  }
  func.func @transform_2(%arg0: i32) -> (i32, i32) {
    %c0_i32 = arith.constant 0 : i32
    %c0_i32_0 = arith.constant 0 : i32
    %c0_i32_1 = arith.constant 0 : i32
    return %c0_i32, %c0_i32_0 : i32, i32
  }
  func.func @transform_3(%arg0: i32) -> (i32, i32) {
    %c0_i32 = arith.constant 0 : i32
    %c0_i32_0 = arith.constant 0 : i32
    %c0_i32_1 = arith.constant 0 : i32
    return %c0_i32, %c0_i32_0 : i32, i32
  }
  func.func @transform_4(%arg0: i32) -> (i32, i32) {
    %c0_i32 = arith.constant 0 : i32
    %c0_i32_0 = arith.constant 0 : i32
    return %arg0, %c0_i32 : i32, i32
  }
}

</mosaic_0001>

<llo_original>
// kernel: tpu_custom_call.1
$region0: #{tpu_custom_call.1}
  #allocation0 [shape = 'u32[]', space=smem, size = 0x4, offset = 0x4, fixed_abs, tag = 'smem constant byte address 0x4 - core index']
  #allocation1 [shape = 'u32[72,128]{1,0:T(1,128)}', space=vmem, size = 0x9000, scoped, tag = 'internal scratch']
  %s0 = inlined_call_operand.vmem [shape: bf16[512,36], index: 0, kind: input, shape index: {}]
  %s1 = inlined_call_operand.vmem [shape: bf16[36,128], index: 1, kind: input, shape index: {}]
  %s2 = inlined_call_operand.vmem [shape: f32[1,128], index: 2, kind: input, shape index: {}]
  %s3 = inlined_call_operand.vmem [shape: f32[1,128], index: 3, kind: input, shape index: {}]
  %s4 = inlined_call_operand.hbm [shape: bf16[512,128], index: 4, kind: output, shape index: {}]
  %s5 = sld [smem:[#allocation0]]
  $region49: #{tpu_custom_call.1} parent=0
    _
  %s7 = ssub.s32 1, %s5
  %s8 = scalar_select 0, %s7, %s5
  $region1: #{tpu_custom_call.1} parent=0
    #allocation2 [shape = 'u8[131072]{0}', space=vmem, size = 0x20000, scoped, tag = 'output window, operand 0']
    #allocation3 [shape = 's32[2]{0}', space=sflag, size = 0x8, scoped, tag = 'scoped memory for tpu_custom_call.1']
    %9 = vsyncpa [#allocation3], 0
    %s10 = scalar_lea.sflag [#allocation3], 1
    %11 = vsyncpa %s10, 0
    loop: start=0, step=1, limit=4
    $region2: #{tpu_custom_call.1} parent=1 // loop_pre_header
      _
    $region3: #{tpu_custom_call.1} parent=1 // loop_header
      %s13 = sphi 0, %s17
      %p14 = scmp.ge.s32.totalorder %s13, 4
      %s23 = sphi 0, %s25
      %s26 = sphi 0, %s23
      %s27 = sphi 0, %s26
      %s43 = sphi 0, %s27
      %s47 = sphi 0, %s47
      %s49 = sphi 0, %s47
      %s50 = sphi 0, %s49
      %s64 = sphi 0, %s50
      %s68 = sphi 0, %s68
      %s70 = sphi 0, %s68
      %s71 = sphi 0, %s70
      %s85 = sphi 0, %s71
      %s89 = sphi 0, %s89
      %s91 = sphi 0, %s89
      %s92 = sphi 0, %s91
      %s106 = sphi 0, %s92
      %s112 = sphi 0, %s114
      %s115 = sphi 0, %s112
      %s116 = sphi 0, %s115
      %s132 = sphi 0, %s116
    $region4: #{tpu_custom_call.1} parent=1 // loop_header_branch
      %16 = sbr.rel (%p14) target = $region8
    $region5: #{tpu_custom_call.1} parent=1 // loop_body
      %s18 = ssub.s32 %s13, 1
      %s19 = ssub.s32 %s13, 2
      %s20 = sadd.s32 %s13, 1
      %s21 = ssub.s32 %s13, %s20
      %p22 = scmp.eq.s32.totalorder %s21, 0
      %s24 = sadd.s32 %s23, 1
      %s25 = scalar_select %p22, %s23, %s24
      %p28 = pneg %p22
      %p29 = scmp.eq.s32.totalorder %s13, 1
      %p30 = por %p28, %p29
      %p31 = scmp.ne.s32.totalorder %s23, %s26
      %p32 = scmp.eq.s32.totalorder %s13, 0
      %p33 = por %p31, %p32
      %p34 = scmp.ne.s32.totalorder %s23, %s26
      %p35 = scmp.eq.s32.totalorder %s18, 1
      %p36 = por %p34, %p35
      %p37 = scmp.ne.s32.totalorder %s26, %s27
      %p38 = scmp.eq.s32.totalorder %s18, 0
      %p39 = por %p37, %p38
      %p40 = scmp.ne.s32.totalorder %s26, %s27
      %p41 = scmp.eq.s32.totalorder %s19, 1
      %p42 = por %p40, %p41
      %p44 = scmp.ne.s32.totalorder %s27, %s43
      %p45 = scmp.eq.s32.totalorder %s19, 0
      %p46 = por %p44, %p45
      %s48 = sadd.s32 %s47, 1
      %p51 = scmp.eq.s32.totalorder %s13, 1
      %p52 = scmp.ne.s32.totalorder %s47, %s49
      %p53 = scmp.eq.s32.totalorder %s13, 0
      %p54 = por %p52, %p53
      %p55 = scmp.ne.s32.totalorder %s47, %s49
      %p56 = scmp.eq.s32.totalorder %s18, 1
      %p57 = por %p55, %p56
      %p58 = scmp.ne.s32.totalorder %s49, %s50
      %p59 = scmp.eq.s32.totalorder %s18, 0
      %p60 = por %p58, %p59
      %p61 = scmp.ne.s32.totalorder %s49, %s50
      %p62 = scmp.eq.s32.totalorder %s19, 1
      %p63 = por %p61, %p62
      %p65 = scmp.ne.s32.totalorder %s50, %s64
      %p66 = scmp.eq.s32.totalorder %s19, 0
      %p67 = por %p65, %p66
      %s69 = sadd.s32 %s68, 1
      %p72 = scmp.eq.s32.totalorder %s13, 1
      %p73 = scmp.ne.s32.totalorder %s68, %s70
      %p74 = scmp.eq.s32.totalorder %s13, 0
      %p75 = por %p73, %p74
      %p76 = scmp.ne.s32.totalorder %s68, %s70
      %p77 = scmp.eq.s32.totalorder %s18, 1
      %p78 = por %p76, %p77
      %p79 = scmp.ne.s32.totalorder %s70, %s71
      %p80 = scmp.eq.s32.totalorder %s18, 0
      %p81 = por %p79, %p80
      %p82 = scmp.ne.s32.totalorder %s70, %s71
      %p83 = scmp.eq.s32.totalorder %s19, 1
      %p84 = por %p82, %p83
      %p86 = scmp.ne.s32.totalorder %s71, %s85
      %p87 = scmp.eq.s32.totalorder %s19, 0
      %p88 = por %p86, %p87
      %s90 = sadd.s32 %s89, 1
      %p93 = scmp.eq.s32.totalorder %s13, 1
      %p94 = scmp.ne.s32.totalorder %s89, %s91
      %p95 = scmp.eq.s32.totalorder %s13, 0
      %p96 = por %p94, %p95
      %p97 = scmp.ne.s32.totalorder %s89, %s91
      %p98 = scmp.eq.s32.totalorder %s18, 1
      %p99 = por %p97, %p98
      %p100 = scmp.ne.s32.totalorder %s91, %s92
      %p101 = scmp.eq.s32.totalorder %s18, 0
      %p102 = por %p100, %p101
      %p103 = scmp.ne.s32.totalorder %s91, %s92
      %p104 = scmp.eq.s32.totalorder %s19, 1
      %p105 = por %p103, %p104
      %p107 = scmp.ne.s32.totalorder %s92, %s106
      %p108 = scmp.eq.s32.totalorder %s19, 0
      %p109 = por %p107, %p108
      %s110 = ssub.s32 %s13, %s20
      %p111 = scmp.eq.s32.totalorder %s110, 0
      %s113 = sadd.s32 %s112, 1
      %s114 = scalar_select %p111, %s112, %s113
      %p117 = pneg %p111
      %p118 = scmp.eq.s32.totalorder %s13, 1
      %p119 = por %p117, %p118
      %p120 = scmp.ne.s32.totalorder %s112, %s115
      %p121 = scmp.eq.s32.totalorder %s13, 0
      %p122 = por %p120, %p121
      %p123 = scmp.ne.s32.totalorder %s112, %s115
      %p124 = scmp.eq.s32.totalorder %s18, 1
      %p125 = por %p123, %p124
      %p126 = scmp.ne.s32.totalorder %s115, %s116
      %p127 = scmp.eq.s32.totalorder %s18, 0
      %p128 = por %p126, %p127
      %p129 = scmp.ne.s32.totalorder %s115, %s116
      %p130 = scmp.eq.s32.totalorder %s19, 1
      %p131 = por %p129, %p130
      %p133 = scmp.ne.s32.totalorder %s116, %s132
      %p134 = scmp.eq.s32.totalorder %s19, 0
      %p135 = por %p133, %p134
      %p136 = scmp.le.s32.totalorder 1, %s13
      %p137 = scmp.lt.s32.totalorder %s13, 3
      %p138 = pnand %p136, %p137
      %p139 = pneg %p138
      // Predicated region
      $region9: #{tpu_custom_call.1} parent=5 // pred_check
        _
      $region10: #{tpu_custom_call.1} parent=5 // pred_check_branch
        %141 = sbr.rel (%p138) target = $region12
      $region11: #{tpu_custom_call.1} parent=5 // pred_region
        %s142 = ssub.s32 %s13, 1
        // Predicated region
        $region13: #{tpu_custom_call.1} parent=11 // pred_check
          %p143 = pneg %p60
        $region14: #{tpu_custom_call.1} parent=11 // pred_check_branch
          %145 = sbr.rel (%p143) target = $region16
        $region15: #{tpu_custom_call.1} parent=11 // pred_region
          _
        $region16: #{tpu_custom_call.1} parent=11 // pred_fallthru
          _
        // Predicated region
        $region17: #{tpu_custom_call.1} parent=11 // pred_check
          %p146 = pneg %p81
        $region18: #{tpu_custom_call.1} parent=11 // pred_check_branch
          %148 = sbr.rel (%p146) target = $region20
        $region19: #{tpu_custom_call.1} parent=11 // pred_region
          _
        $region20: #{tpu_custom_call.1} parent=11 // pred_fallthru
          _
        // Predicated region
        $region21: #{tpu_custom_call.1} parent=11 // pred_check
          %p149 = pneg %p102
        $region22: #{tpu_custom_call.1} parent=11 // pred_check_branch
          %151 = sbr.rel (%p149) target = $region24
        $region23: #{tpu_custom_call.1} parent=11 // pred_region
          _
        $region24: #{tpu_custom_call.1} parent=11 // pred_fallthru
          _
      $region12: #{tpu_custom_call.1} parent=5 // pred_fallthru
        _
      %p152 = scmp.lt.s32.totalorder %s13, 2
      // Predicated region
      $region25: #{tpu_custom_call.1} parent=5 // pred_check
        %p153 = pneg %p152
      $region26: #{tpu_custom_call.1} parent=5 // pred_check_branch
        %155 = sbr.rel (%p153) target = $region28
      $region27: #{tpu_custom_call.1} parent=5 // pred_region
        // Predicated region
        $region29: #{tpu_custom_call.1} parent=27 // pred_check
          %p156 = pneg %p33
        $region30: #{tpu_custom_call.1} parent=27 // pred_check_branch
          %158 = sbr.rel (%p156) target = $region32
        $region31: #{tpu_custom_call.1} parent=27 // pred_region
          %s159 = smul.u32 32, %s13
          %p160 = scmp.lt.s32.totalorder %s159, 63
          %s161 = scalar_select %p160, %s159, 63
          %s162 = smul.addr %s161, 4
          %s163 = scalar_lea.vmem %s0, %s162
          %s164 = smul.u32 32, %s13
        $region32: #{tpu_custom_call.1} parent=27 // pred_fallthru
          _
      $region28: #{tpu_custom_call.1} parent=5 // pred_fallthru
        _
      %p165 = scmp.le.s32.totalorder 1, %s13
      %p166 = scmp.lt.s32.totalorder %s13, 3
      %p167 = pnand %p165, %p166
      %p168 = pneg %p167
      // Predicated region
      $region33: #{tpu_custom_call.1} parent=5 // pred_check
        _
      $region34: #{tpu_custom_call.1} parent=5 // pred_check_branch
        %170 = sbr.rel (%p167) target = $region36
      $region35: #{tpu_custom_call.1} parent=5 // pred_region
        %s171 = ssub.s32 %s13, 1
        %s172 = smul.u32 32, %s18
        %p173 = scmp.lt.s32.totalorder %s172, 63
        %s174 = scalar_select %p173, %s172, 63
        %s175 = smul.addr %s174, 4
        %s176 = scalar_lea.vmem %s0, %s175
        %p177 = pneg %p39
        %p178 = pneg %p36
        %p179 = pneg %p60
        %p180 = pneg %p57
        %p181 = pneg %p81
        %p182 = pneg %p78
        %p183 = pneg %p102
        %p184 = pneg %p99
        %p185 = pneg %p128
        %p186 = pneg %p125
        %s187 = sand.u32 %s115, 1
        %s188 = scalar_lea.sflag [#allocation3], %s187
        %s189 = sand.u32 %s115, 1
        %s190 = smul.addr %s189, 128
        %s191 = scalar_lea.vmem [#allocation2], %s190
        %s192 = smul.u32 32, %s18
        %p193 = scmp.lt.s32.totalorder %s192, 63
        %s194 = scalar_select %p193, %s192, 63
        %s195 = smul.addr %s194, 4
        %s196 = scalar_lea.vmem %s0, %s195
        %s197 = smul.u32 32, %s18
        %s198 = smul.u32 32, %s18
        %v200 = vld [vmem:[%s196] sm:$0xf]
        %v201 = vld [vmem:[%s196 + $0x4] sm:$0xf]
        %v202 = vld [vmem:[%s196 + $0x8] sm:$0xf]
        %v203 = vld [vmem:[%s196 + $0xc] sm:$0xf]
        %v204 = vld [vmem:[%s196 + $0x10] sm:$0xf]
        %v205 = vld [vmem:[%s196 + $0x14] sm:$0xf]
        %v206 = vld [vmem:[%s196 + $0x18] sm:$0xf]
        %v207 = vld [vmem:[%s196 + $0x1c] sm:$0xf]
        %v208 = vld [vmem:[%s196 + $0x20] sm:$0xf]
        %v209 = vld [vmem:[%s196 + $0x24] sm:$0xf]
        %v210 = vld [vmem:[%s196 + $0x28] sm:$0xf]
        %v211 = vld [vmem:[%s196 + $0x2c] sm:$0xf]
        %v212 = vld [vmem:[%s196 + $0x30] sm:$0xf]
        %v213 = vld [vmem:[%s196 + $0x34] sm:$0xf]
        %v214 = vld [vmem:[%s196 + $0x38] sm:$0xf]
        %v215 = vld [vmem:[%s196 + $0x3c] sm:$0xf]
        %v216 = vld [vmem:[%s196 + $0x40] sm:$0xf]
        %v217 = vld [vmem:[%s196 + $0x44] sm:$0xf]
        %v218 = vld [vmem:[%s196 + $0x48] sm:$0xf]
        %v219 = vld [vmem:[%s196 + $0x4c] sm:$0xf]
        %v220 = vld [vmem:[%s196 + $0x50] sm:$0xf]
        %v221 = vld [vmem:[%s196 + $0x54] sm:$0xf]
        %v222 = vld [vmem:[%s196 + $0x58] sm:$0xf]
        %v223 = vld [vmem:[%s196 + $0x5c] sm:$0xf]
        %v224 = vld [vmem:[%s196 + $0x60] sm:$0xf]
        %v225 = vld [vmem:[%s196 + $0x64] sm:$0xf]
        %v226 = vld [vmem:[%s196 + $0x68] sm:$0xf]
        %v227 = vld [vmem:[%s196 + $0x6c] sm:$0xf]
        %v228 = vld [vmem:[%s196 + $0x70] sm:$0xf]
        %v229 = vld [vmem:[%s196 + $0x74] sm:$0xf]
        %v230 = vld [vmem:[%s196 + $0x78] sm:$0xf]
        %v231 = vld [vmem:[%s196 + $0x7c] sm:$0xf]
        %v232 = vld [vmem:[%s1] sm:$0xf]
        %v233 = vld [vmem:[%s1 + $0x4] sm:$0xf]
        %v234 = vld [vmem:[%s1 + $0x8] sm:$0xf]
        %v235 = vld [vmem:[%s1 + $0xc] sm:$0xf]
        %v236 = vld [vmem:[%s1 + $0x10] sm:$0x3]
        %v269 = vunpack.c.l.b16 %v200
        %v270 = vunpack.c.l.b16 %v201
        %v271 = vunpack.c.l.b16 %v202
        %v272 = vunpack.c.l.b16 %v203
        %v273 = vunpack.c.l.b16 %v204
        %v274 = vunpack.c.l.b16 %v205
        %v275 = vunpack.c.l.b16 %v206
        %v276 = vunpack.c.l.b16 %v207
        %v277 = vunpack.c.l.b16 %v208
        %v278 = vunpack.c.l.b16 %v209
        %v279 = vunpack.c.l.b16 %v210
        %v280 = vunpack.c.l.b16 %v211
        %v281 = vunpack.c.l.b16 %v212
        %v282 = vunpack.c.l.b16 %v213
        %v283 = vunpack.c.l.b16 %v214
        %v284 = vunpack.c.l.b16 %v215
        %v285 = vunpack.c.l.b16 %v216
        %v286 = vunpack.c.l.b16 %v217
        %v287 = vunpack.c.l.b16 %v218
        %v288 = vunpack.c.l.b16 %v219
        %v289 = vunpack.c.l.b16 %v220
        %v290 = vunpack.c.l.b16 %v221
        %v291 = vunpack.c.l.b16 %v222
        %v292 = vunpack.c.l.b16 %v223
        %v293 = vunpack.c.l.b16 %v224
        %v294 = vunpack.c.l.b16 %v225
        %v295 = vunpack.c.l.b16 %v226
        %v296 = vunpack.c.l.b16 %v227
        %v297 = vunpack.c.l.b16 %v228
        %v298 = vunpack.c.l.b16 %v229
        %v299 = vunpack.c.l.b16 %v230
        %v300 = vunpack.c.l.b16 %v231
        %v301 = vpack.c.b16 %v270, %v269
        %v302 = vpack.c.b16 %v272, %v271
        %v303 = vpack.c.b16 %v274, %v273
        %v304 = vpack.c.b16 %v276, %v275
        %v305 = vpack.c.b16 %v278, %v277
        %v306 = vpack.c.b16 %v280, %v279
        %v307 = vpack.c.b16 %v282, %v281
        %v308 = vpack.c.b16 %v284, %v283
        %v309 = vpack.c.b16 %v286, %v285
        %v310 = vpack.c.b16 %v288, %v287
        %v311 = vpack.c.b16 %v290, %v289
        %v312 = vpack.c.b16 %v292, %v291
        %v313 = vpack.c.b16 %v294, %v293
        %v314 = vpack.c.b16 %v296, %v295
        %v315 = vpack.c.b16 %v298, %v297
        %v316 = vpack.c.b16 %v300, %v299
        %v322 = vunpack.c.l.b16 %v232
        %v323 = vunpack.c.l.b16 %v233
        %v324 = vunpack.c.l.b16 %v234
        %v325 = vunpack.c.l.b16 %v235
        %v326 = vunpack.c.l.b16 %v236
        %v327 = vpack.c.b16 %v323, %v322
        %v328 = vpack.c.b16 %v325, %v324
        %v329 = vpack.c.b16 %v326, %v326
        %vm332 = vcmask 293888
        %v334 = vsel %vm332, %v301, 0
        %v337 = vsel %vm332, %v302, 0
        %v340 = vsel %vm332, %v303, 0
        %v343 = vsel %vm332, %v304, 0
        %v346 = vsel %vm332, %v305, 0
        %v349 = vsel %vm332, %v306, 0
        %v352 = vsel %vm332, %v307, 0
        %v355 = vsel %vm332, %v308, 0
        %v358 = vsel %vm332, %v309, 0
        %v361 = vsel %vm332, %v310, 0
        %v364 = vsel %vm332, %v311, 0
        %v367 = vsel %vm332, %v312, 0
        %v370 = vsel %vm332, %v313, 0
        %v373 = vsel %vm332, %v314, 0
        %v376 = vsel %vm332, %v315, 0
        %v379 = vsel %vm332, %v316, 0
        %vm381 = vcmask 1041408
        %v383 = vsel %vm381, %v329, 0
        %385 = vmatpush.bf16.msra.mxu0 0
        %386 = vmatpush.bf16.msra.mxu0 0
        %387 = vmatpush.bf16.msra.mxu0 0
        %388 = vmatpush.bf16.msra.mxu0 0
        %389 = vmatpush.bf16.msra.mxu0 0
        %390 = vmatpush.bf16.msra.mxu0 %v383
        %391 = vmatpush.bf16.msra.mxu0 %v328
        %392 = vmatpush.bf16.msra.mxu0 %v327
        %393 = vmatmul.bf16.gmra.mxu0 %v334
        %v394 = vpop.f32.mrf.mxu0
        %v395 = vadd.f32 0.0, %v394
        %v396 = vpop.f32.mrf.mxu0
        %v397 = vadd.f32 0.0, %v396
        %398 = vmatmul.bf16.gmra.mxu0 %v337
        %v399 = vpop.f32.mrf.mxu0
        %v400 = vadd.f32 0.0, %v399
        %v401 = vpop.f32.mrf.mxu0
        %v402 = vadd.f32 0.0, %v401
        %403 = vmatmul.bf16.gmra.mxu0 %v340
        %v404 = vpop.f32.mrf.mxu0
        %v405 = vadd.f32 0.0, %v404
        %v406 = vpop.f32.mrf.mxu0
        %v407 = vadd.f32 0.0, %v406
        %408 = vmatmul.bf16.gmra.mxu0 %v343
        %v409 = vpop.f32.mrf.mxu0
        %v410 = vadd.f32 0.0, %v409
        %v411 = vpop.f32.mrf.mxu0
        %v412 = vadd.f32 0.0, %v411
        %413 = vmatmul.bf16.gmra.mxu0 %v346
        %v414 = vpop.f32.mrf.mxu0
        %v415 = vadd.f32 0.0, %v414
        %v416 = vpop.f32.mrf.mxu0
        %v417 = vadd.f32 0.0, %v416
        %418 = vmatmul.bf16.gmra.mxu0 %v349
        %v419 = vpop.f32.mrf.mxu0
        %v420 = vadd.f32 0.0, %v419
        %v421 = vpop.f32.mrf.mxu0
        %v422 = vadd.f32 0.0, %v421
        %423 = vmatmul.bf16.gmra.mxu0 %v352
        %v424 = vpop.f32.mrf.mxu0
        %v425 = vadd.f32 0.0, %v424
        %v426 = vpop.f32.mrf.mxu0
        %v427 = vadd.f32 0.0, %v426
        %428 = vmatmul.bf16.gmra.mxu0 %v355
        %v429 = vpop.f32.mrf.mxu0
        %v430 = vadd.f32 0.0, %v429
        %v431 = vpop.f32.mrf.mxu0
        %v432 = vadd.f32 0.0, %v431
        %433 = vmatmul.bf16.gmra.mxu0 %v358
        %v434 = vpop.f32.mrf.mxu0
        %v435 = vadd.f32 0.0, %v434
        %v436 = vpop.f32.mrf.mxu0
        %v437 = vadd.f32 0.0, %v436
        %438 = vmatmul.bf16.gmra.mxu0 %v361
        %v439 = vpop.f32.mrf.mxu0
        %v440 = vadd.f32 0.0, %v439
        %v441 = vpop.f32.mrf.mxu0
        %v442 = vadd.f32 0.0, %v441
        %443 = vmatmul.bf16.gmra.mxu0 %v364
        %v444 = vpop.f32.mrf.mxu0
        %v445 = vadd.f32 0.0, %v444
        %v446 = vpop.f32.mrf.mxu0
        %v447 = vadd.f32 0.0, %v446
        %448 = vmatmul.bf16.gmra.mxu0 %v367
        %v449 = vpop.f32.mrf.mxu0
        %v450 = vadd.f32 0.0, %v449
        %v451 = vpop.f32.mrf.mxu0
        %v452 = vadd.f32 0.0, %v451
        %453 = vmatmul.bf16.gmra.mxu0 %v370
        %v454 = vpop.f32.mrf.mxu0
        %v455 = vadd.f32 0.0, %v454
        %v456 = vpop.f32.mrf.mxu0
        %v457 = vadd.f32 0.0, %v456
        %458 = vmatmul.bf16.gmra.mxu0 %v373
        %v459 = vpop.f32.mrf.mxu0
        %v460 = vadd.f32 0.0, %v459
        %v461 = vpop.f32.mrf.mxu0
        %v462 = vadd.f32 0.0, %v461
        %463 = vmatmul.bf16.gmra.mxu0 %v376
        %v464 = vpop.f32.mrf.mxu0
        %v465 = vadd.f32 0.0, %v464
        %v466 = vpop.f32.mrf.mxu0
        %v467 = vadd.f32 0.0, %v466
        %468 = vmatmul.bf16.gmra.mxu0 %v379
        %v469 = vpop.f32.mrf.mxu0
        %v470 = vadd.f32 0.0, %v469
        %v471 = vpop.f32.mrf.mxu0
        %v472 = vadd.f32 0.0, %v471
        %473 = vdwg.mxu0
        %v474 = vld [vmem:[%s2] sm:$0x1]
        %v476 = vperm.slane %v474, 0
        %v478 = vmul.f32 %v395, %v476
        %v479 = vmul.f32 %v397, %v476
        %v480 = vmul.f32 %v400, %v476
        %v481 = vmul.f32 %v402, %v476
        %v482 = vmul.f32 %v405, %v476
        %v483 = vmul.f32 %v407, %v476
        %v484 = vmul.f32 %v410, %v476
        %v485 = vmul.f32 %v412, %v476
        %v486 = vmul.f32 %v415, %v476
        %v487 = vmul.f32 %v417, %v476
        %v488 = vmul.f32 %v420, %v476
        %v489 = vmul.f32 %v422, %v476
        %v490 = vmul.f32 %v425, %v476
        %v491 = vmul.f32 %v427, %v476
        %v492 = vmul.f32 %v430, %v476
        %v493 = vmul.f32 %v432, %v476
        %v494 = vmul.f32 %v435, %v476
        %v495 = vmul.f32 %v437, %v476
        %v496 = vmul.f32 %v440, %v476
        %v497 = vmul.f32 %v442, %v476
        %v498 = vmul.f32 %v445, %v476
        %v499 = vmul.f32 %v447, %v476
        %v500 = vmul.f32 %v450, %v476
        %v501 = vmul.f32 %v452, %v476
        %v502 = vmul.f32 %v455, %v476
        %v503 = vmul.f32 %v457, %v476
        %v504 = vmul.f32 %v460, %v476
        %v505 = vmul.f32 %v462, %v476
        %v506 = vmul.f32 %v465, %v476
        %v507 = vmul.f32 %v467, %v476
        %v508 = vmul.f32 %v470, %v476
        %v509 = vmul.f32 %v472, %v476
        %v510 = vld [vmem:[%s3] sm:$0x1]
        %v512 = vperm.slane %v510, 0
        %v514 = vadd.f32 %v478, %v512
        %v515 = vadd.f32 %v479, %v512
        %v516 = vadd.f32 %v480, %v512
        %v517 = vadd.f32 %v481, %v512
        %v518 = vadd.f32 %v482, %v512
        %v519 = vadd.f32 %v483, %v512
        %v520 = vadd.f32 %v484, %v512
        %v521 = vadd.f32 %v485, %v512
        %v522 = vadd.f32 %v486, %v512
        %v523 = vadd.f32 %v487, %v512
        %v524 = vadd.f32 %v488, %v512
        %v525 = vadd.f32 %v489, %v512
        %v526 = vadd.f32 %v490, %v512
        %v527 = vadd.f32 %v491, %v512
        %v528 = vadd.f32 %v492, %v512
        %v529 = vadd.f32 %v493, %v512
        %v530 = vadd.f32 %v494, %v512
        %v531 = vadd.f32 %v495, %v512
        %v532 = vadd.f32 %v496, %v512
        %v533 = vadd.f32 %v497, %v512
        %v534 = vadd.f32 %v498, %v512
        %v535 = vadd.f32 %v499, %v512
        %v536 = vadd.f32 %v500, %v512
        %v537 = vadd.f32 %v501, %v512
        %v538 = vadd.f32 %v502, %v512
        %v539 = vadd.f32 %v503, %v512
        %v540 = vadd.f32 %v504, %v512
        %v541 = vadd.f32 %v505, %v512
        %v542 = vadd.f32 %v506, %v512
        %v543 = vadd.f32 %v507, %v512
        %v544 = vadd.f32 %v508, %v512
        %v545 = vadd.f32 %v509, %v512
        %v546 = vmax.f32 %v514, 0.0
        %v547 = vmax.f32 %v515, 0.0
        %v548 = vmax.f32 %v516, 0.0
        %v549 = vmax.f32 %v517, 0.0
        %v550 = vmax.f32 %v518, 0.0
        %v551 = vmax.f32 %v519, 0.0
        %v552 = vmax.f32 %v520, 0.0
        %v553 = vmax.f32 %v521, 0.0
        %v554 = vmax.f32 %v522, 0.0
        %v555 = vmax.f32 %v523, 0.0
        %v556 = vmax.f32 %v524, 0.0
        %v557 = vmax.f32 %v525, 0.0
        %v558 = vmax.f32 %v526, 0.0
        %v559 = vmax.f32 %v527, 0.0
        %v560 = vmax.f32 %v528, 0.0
        %v561 = vmax.f32 %v529, 0.0
        %v562 = vmax.f32 %v530, 0.0
        %v563 = vmax.f32 %v531, 0.0
        %v564 = vmax.f32 %v532, 0.0
        %v565 = vmax.f32 %v533, 0.0
        %v566 = vmax.f32 %v534, 0.0
        %v567 = vmax.f32 %v535, 0.0
        %v568 = vmax.f32 %v536, 0.0
        %v569 = vmax.f32 %v537, 0.0
        %v570 = vmax.f32 %v538, 0.0
        %v571 = vmax.f32 %v539, 0.0
        %v572 = vmax.f32 %v540, 0.0
        %v573 = vmax.f32 %v541, 0.0
        %v574 = vmax.f32 %v542, 0.0
        %v575 = vmax.f32 %v543, 0.0
        %v576 = vmax.f32 %v544, 0.0
        %v577 = vmax.f32 %v545, 0.0
        %v578 = vpack.c.bf16 %v546, %v546
        %v579 = vpack.c.bf16 %v547, %v547
        %v580 = vpack.c.bf16 %v548, %v548
        %v581 = vpack.c.bf16 %v549, %v549
        %v582 = vpack.c.bf16 %v550, %v550
        %v583 = vpack.c.bf16 %v551, %v551
        %v584 = vpack.c.bf16 %v552, %v552
        %v585 = vpack.c.bf16 %v553, %v553
        %v586 = vpack.c.bf16 %v554, %v554
        %v587 = vpack.c.bf16 %v555, %v555
        %v588 = vpack.c.bf16 %v556, %v556
        %v589 = vpack.c.bf16 %v557, %v557
        %v590 = vpack.c.bf16 %v558, %v558
        %v591 = vpack.c.bf16 %v559, %v559
        %v592 = vpack.c.bf16 %v560, %v560
        %v593 = vpack.c.bf16 %v561, %v561
        %v594 = vpack.c.bf16 %v562, %v562
        %v595 = vpack.c.bf16 %v563, %v563
        %v596 = vpack.c.bf16 %v564, %v564
        %v597 = vpack.c.bf16 %v565, %v565
        %v598 = vpack.c.bf16 %v566, %v566
        %v599 = vpack.c.bf16 %v567, %v567
        %v600 = vpack.c.bf16 %v568, %v568
        %v601 = vpack.c.bf16 %v569, %v569
        %v602 = vpack.c.bf16 %v570, %v570
        %v603 = vpack.c.bf16 %v571, %v571
        %v604 = vpack.c.bf16 %v572, %v572
        %v605 = vpack.c.bf16 %v573, %v573
        %v606 = vpack.c.bf16 %v574, %v574
        %v607 = vpack.c.bf16 %v575, %v575
        %v608 = vpack.c.bf16 %v576, %v576
        %v609 = vpack.c.bf16 %v577, %v577
        %610 = vst [vmem:[%s191] sm:$0xf] %v578
        %611 = vst [vmem:[%s191 + $0x4] sm:$0xf] %v579
        %612 = vst [vmem:[%s191 + $0x8] sm:$0xf] %v580
        %613 = vst [vmem:[%s191 + $0xc] sm:$0xf] %v581
        %614 = vst [vmem:[%s191 + $0x10] sm:$0xf] %v582
        %615 = vst [vmem:[%s191 + $0x14] sm:$0xf] %v583
        %616 = vst [vmem:[%s191 + $0x18] sm:$0xf] %v584
        %617 = vst [vmem:[%s191 + $0x1c] sm:$0xf] %v585
        %618 = vst [vmem:[%s191 + $0x20] sm:$0xf] %v586
        %619 = vst [vmem:[%s191 + $0x24] sm:$0xf] %v587
        %620 = vst [vmem:[%s191 + $0x28] sm:$0xf] %v588
        %621 = vst [vmem:[%s191 + $0x2c] sm:$0xf] %v589
        %622 = vst [vmem:[%s191 + $0x30] sm:$0xf] %v590
        %623 = vst [vmem:[%s191 + $0x34] sm:$0xf] %v591
        %624 = vst [vmem:[%s191 + $0x38] sm:$0xf] %v592
        %625 = vst [vmem:[%s191 + $0x3c] sm:$0xf] %v593
        %626 = vst [vmem:[%s191 + $0x40] sm:$0xf] %v594
        %627 = vst [vmem:[%s191 + $0x44] sm:$0xf] %v595
        %628 = vst [vmem:[%s191 + $0x48] sm:$0xf] %v596
        %629 = vst [vmem:[%s191 + $0x4c] sm:$0xf] %v597
        %630 = vst [vmem:[%s191 + $0x50] sm:$0xf] %v598
        %631 = vst [vmem:[%s191 + $0x54] sm:$0xf] %v599
        %632 = vst [vmem:[%s191 + $0x58] sm:$0xf] %v600
        %633 = vst [vmem:[%s191 + $0x5c] sm:$0xf] %v601
        %634 = vst [vmem:[%s191 + $0x60] sm:$0xf] %v602
        %635 = vst [vmem:[%s191 + $0x64] sm:$0xf] %v603
        %636 = vst [vmem:[%s191 + $0x68] sm:$0xf] %v604
        %637 = vst [vmem:[%s191 + $0x6c] sm:$0xf] %v605
        %638 = vst [vmem:[%s191 + $0x70] sm:$0xf] %v606
        %639 = vst [vmem:[%s191 + $0x74] sm:$0xf] %v607
        %640 = vst [vmem:[%s191 + $0x78] sm:$0xf] %v608
        %641 = vst [vmem:[%s191 + $0x7c] sm:$0xf] %v609
        %s642 = sand.u32 %s115, 1
        %s643 = scalar_lea.sflag [#allocation3], %s642
        %s644 = sand.u32 %s115, 1
        %s645 = smul.addr %s644, 128
        %s646 = scalar_lea.vmem [#allocation2], %s645
        // Predicated region
        $region37: #{tpu_custom_call.1} parent=35 // pred_check
          %p647 = pneg %p125
        $region38: #{tpu_custom_call.1} parent=35 // pred_check_branch
          %649 = sbr.rel (%p647) target = $region40
        $region39: #{tpu_custom_call.1} parent=35 // pred_region
          %s650 = smul.u32 32, %s18
          %652 = vsyncadd %s643, 0
          %s653 = smul.addr %s650, 4
          %s654 = scalar_lea.hbm %s4, %s653
          %s655 = sshll.u32 %s646, 4
          %s656 = int_to_ptr.vmem [resolvable:$true] %s655
          %s657 = sshll.u32 %s654, 4
          %s658 = int_to_ptr.hbm [resolvable:$true] %s657
          %663 = dma.vmem_to_hbm [thread:$0]  %s656, 2048, %s658, %s643, 64, 64, 4
        $region40: #{tpu_custom_call.1} parent=35 // pred_fallthru
          _
      $region36: #{tpu_custom_call.1} parent=5 // pred_fallthru
        _
      %p664 = scmp.le.s32.totalorder 2, %s13
      // Predicated region
      $region41: #{tpu_custom_call.1} parent=5 // pred_check
        %p665 = pneg %p664
      $region42: #{tpu_custom_call.1} parent=5 // pred_check_branch
        %667 = sbr.rel (%p665) target = $region44
      $region43: #{tpu_custom_call.1} parent=5 // pred_region
        %s668 = ssub.s32 %s13, 2
        // Predicated region
        $region45: #{tpu_custom_call.1} parent=43 // pred_check
          %p669 = pneg %p131
        $region46: #{tpu_custom_call.1} parent=43 // pred_check_branch
          %671 = sbr.rel (%p669) target = $region48
        $region47: #{tpu_custom_call.1} parent=43 // pred_region
          %s672 = sand.u32 %s116, 1
          %s673 = scalar_lea.sflag [#allocation3], %s672
          %s674 = sand.u32 %s116, 1
          %s675 = smul.addr %s674, 128
          %s676 = scalar_lea.vmem [#allocation2], %s675
          %678 = dma.done %s673, 2048
        $region48: #{tpu_custom_call.1} parent=43 // pred_fallthru
          _
      $region44: #{tpu_custom_call.1} parent=5 // pred_fallthru
        _
    $region6: #{tpu_custom_call.1} parent=1 // loop_footer
      %s17 = sadd.s32 1, %s13
    $region7: #{tpu_custom_call.1} parent=1 // loop_footer_branch
      %12 = sbr.rel target = $region3
    $region8: #{tpu_custom_call.1} parent=1 // loop_exit
      _
    %679 = vsyncpa [#allocation3], 1
    %s680 = scalar_lea.sflag [#allocation3], 1
    %681 = vsyncpa %s680, 1

</llo_original>
